<compile_context>
chip_gen: v5e
topology: v5e:2x2
jax: 0.10.0
libtpu: 0.0.40
codegen_flags: <defaults>
</compile_context>

<pallas_src>
import jax
import jax.numpy as jnp
from jax.experimental import pallas as pl
from jax.experimental.pallas import tpu as pltpu


# ----------------------------------------------------------------------------
# Kernel: per-pixel clipped cosine ratio (the spectral-angle cosine)
# ----------------------------------------------------------------------------
def _sam_ratio_kernel(out_ref, lab_ref, ratio_ref):
    # out_ref / lab_ref: (1, C, T) in native dtype; ratio_ref: (1, 1, T) f32.
    eps = jnp.float32(1e-8)
    o = out_ref[...].astype(jnp.float32) + eps          # cast in VMEM (VPU, free)
    l = lab_ref[...].astype(jnp.float32) + eps
    dot = jnp.sum(o * l, axis=1, keepdims=True)         # (1, 1, T), f32 accum
    oo = jnp.sum(o * o, axis=1, keepdims=True)
    ll = jnp.sum(l * l, axis=1, keepdims=True)
    # dot / sqrt(oo*ll) -> dot * rsqrt(oo*ll): EUP slot, exact (not approx).
    ratio = dot * jax.lax.rsqrt(oo * ll)
    ratio_ref[...] = jnp.clip(ratio, -1.0, 1.0)


def _choose_tile(hw, batch, chans, in_itemsize, vmem_budget_bytes):
    """Pick a lane-dense pixel tile T (multiple of 128) and padded HW."""
    # Per grid step (double-buffered): 2 inputs x 2 bufs x C x T x itemsize
    # plus the f32 ratio output x 2 bufs x T x 4.
    bytes_per_lane = 2 * 2 * chans * in_itemsize + 2 * 4
    t_max = max(128, (vmem_budget_bytes // bytes_per_lane) // 128 * 128)
    T = min(t_max, 4096)                                 # cap DMA-run length
    hw_128 = -(-hw // 128) * 128                         # round up to lane width
    if T >= hw_128:
        T = hw_128
    # v7x has 2 TensorCores: make sure the parallel grid has >= 2 steps.
    if batch * (-(-hw_128 // T)) < 2 and T > 128:
        T = max(128, (T // 2) // 128 * 128)
    hw_pad = -(-hw // T) * T                             # pad HW to multiple of T
    return T, hw_pad


def sam_ratio(output_flat, label_flat, *, vmem_budget_bytes=16 * 1024 * 1024):
    """(B, C, HW) x2 (any float dtype) -> (B, HW) float32 clipped cos ratio."""
    B, C, HW = output_flat.shape
    itemsize = max(jnp.dtype(output_flat.dtype).itemsize,
                   jnp.dtype(label_flat.dtype).itemsize)
    T, HW_pad = _choose_tile(HW, B, C, itemsize, vmem_budget_bytes)

    if HW_pad != HW:
        pad = HW_pad - HW
        # Zero padding is benign (ratio -> 1 there); padded lanes are sliced
        # off before the epilogue so the mean stays unbiased.
        output_flat = jnp.pad(output_flat, ((0, 0), (0, 0), (0, pad)))
        label_flat = jnp.pad(label_flat, ((0, 0), (0, 0), (0, pad)))

    grid = (B, HW_pad // T)
    ratio = pl.pallas_call(
        _sam_ratio_kernel,
        out_shape=jax.ShapeDtypeStruct((B, 1, HW_pad), jnp.float32),
        grid=grid,
        in_specs=[pl.BlockSpec((1, C, T), lambda b, t: (b, 0, t)),
                  pl.BlockSpec((1, C, T), lambda b, t: (b, 0, t))],
        out_specs=pl.BlockSpec((1, 1, T), lambda b, t: (b, 0, t)),
        compiler_params=pltpu.CompilerParams(
            dimension_semantics=("parallel", "parallel"),
            vmem_limit_bytes=32 * 1024 * 1024),
    )(output_flat, label_flat)
    return ratio[:, 0, :HW]                              # (B, HW), valid pixels


# ----------------------------------------------------------------------------
# Full SAM loss forward (matches the PyTorch module)
# ----------------------------------------------------------------------------
def sam_loss(output, label):
    # output / label: (B, C, *spatial); channel reduction is over axis=1.
    B, C = output.shape[0], output.shape[1]
    o = output.reshape(B, C, -1)                         # native dtype, no HBM f32 copy
    l = label.reshape(B, C, -1)
    ratio = sam_ratio(o, l)                              # (B, HW) f32, clipped
    # TODO(synk): acos + mean epilogue on the tiny (B, HW) map is plain JAX.
    angle = jnp.arccos(ratio) * (180.0 / jnp.pi)
    return jnp.mean(angle)


# ----------------------------------------------------------------------------
# Pure-JAX reference (mirrors the PyTorch forward exactly) for validation
# ----------------------------------------------------------------------------
def reference_sam_loss(output, label):
    output = output.astype(jnp.float32)
    label = label.astype(jnp.float32)
    eps = 1e-8
    num = jnp.sum((output + eps) * (label + eps), axis=1)
    den = jnp.sqrt(jnp.sum((output + eps) * (output + eps), axis=1)
                   * jnp.sum((label + eps) * (label + eps), axis=1))
    ratio = jnp.clip(num / den, -1.0, 1.0)
    angle = jnp.arccos(ratio) * 180.0 / jnp.pi
    return jnp.mean(angle)


if __name__ == "__main__":
    key = jax.random.PRNGKey(0)

    # Case 1: hyperspectral-ish, lane-aligned spatial (31 bands, 16x16 patch).
    B, C, H, W = 2, 31, 16, 16
    k1, k2, k3, k4 = jax.random.split(key, 4)
    out1 = jax.random.uniform(k1, (B, C, H, W), jnp.float32, 0.05, 1.0)
    lab1 = jax.random.uniform(k2, (B, C, H, W), jnp.float32, 0.05, 1.0)
    loss1 = jax.block_until_ready(sam_loss(out1, lab1))
    ref1 = reference_sam_loss(out1, lab1)
    assert loss1.shape == ()
    if not bool(jnp.allclose(loss1, ref1, rtol=1e-4, atol=1e-4)):
        raise SystemExit(f"mismatch vs reference (case 1): {loss1} vs {ref1}")

    # Case 2: non-128-aligned spatial size (exercises the padding path).
    H2, W2 = 13, 13
    out2 = jax.random.uniform(k3, (B, C, H2, W2), jnp.float32, 0.05, 1.0)
    lab2 = jax.random.uniform(k4, (B, C, H2, W2), jnp.float32, 0.05, 1.0)
    loss2 = jax.block_until_ready(sam_loss(out2, lab2))
    ref2 = reference_sam_loss(out2, lab2)
    if not bool(jnp.allclose(loss2, ref2, rtol=1e-4, atol=1e-4)):
        raise SystemExit(f"mismatch vs reference (case 2): {loss2} vs {ref2}")

    print("KERNEL_OK")
</pallas_src>

<mosaic_0001>
module attributes {stable_mosaic.version = 11 : i64} {
  func.func @_sam_ratio_kernel(%arg0: i32, %arg1: i32, %arg2: memref<1x31x256xf32, #tpu.memory_space<vmem>>, %arg3: memref<1x31x256xf32, #tpu.memory_space<vmem>>, %arg4: memref<1x1x256xf32, #tpu.memory_space<vmem>>) attributes {dimension_semantics = [#tpu.dimension_semantics<parallel>, #tpu.dimension_semantics<parallel>], iteration_bounds = array<i64: 2, 1>, scalar_prefetch = 0 : i64, scratch_operands = 0 : i64, tpu.core_type = #tpu.core_type<tc>, window_params = [{transform_indices = @transform_0, window_bounds = array<i64: 1, 31, 256>}, {transform_indices = @transform_1, window_bounds = array<i64: 1, 31, 256>}, {transform_indices = @transform_2, window_bounds = array<i64: 1, 1, 256>}]} {
    %c0 = arith.constant 0 : index
    %c0_0 = arith.constant 0 : index
    %c0_1 = arith.constant 0 : index
    %0 = vector.load %arg2[%c0, %c0_0, %c0_1] : memref<1x31x256xf32, #tpu.memory_space<vmem>>, vector<1x31x256xf32>
    %cst = arith.constant 9.99999993E-9 : f32
    %1 = vector.broadcast %cst : f32 to vector<1x31x256xf32>
    %2 = arith.addf %0, %1 : vector<1x31x256xf32>
    %c0_2 = arith.constant 0 : index
    %c0_3 = arith.constant 0 : index
    %c0_4 = arith.constant 0 : index
    %3 = vector.load %arg3[%c0_2, %c0_3, %c0_4] : memref<1x31x256xf32, #tpu.memory_space<vmem>>, vector<1x31x256xf32>
    %cst_5 = arith.constant 9.99999993E-9 : f32
    %4 = vector.broadcast %cst_5 : f32 to vector<1x31x256xf32>
    %5 = arith.addf %3, %4 : vector<1x31x256xf32>
    %6 = arith.mulf %2, %5 : vector<1x31x256xf32>
    %cst_6 = arith.constant dense<0.000000e+00> : vector<1x256xf32>
    %7 = vector.multi_reduction <add>, %6, %cst_6 [1] : vector<1x31x256xf32> to vector<1x256xf32>
    %8 = vector.shape_cast %7 : vector<1x256xf32> to vector<1x1x256xf32>
    %9 = arith.mulf %2, %2 : vector<1x31x256xf32>
    %cst_7 = arith.constant dense<0.000000e+00> : vector<1x256xf32>
    %10 = vector.multi_reduction <add>, %9, %cst_7 [1] : vector<1x31x256xf32> to vector<1x256xf32>
    %11 = vector.shape_cast %10 : vector<1x256xf32> to vector<1x1x256xf32>
    %12 = arith.mulf %5, %5 : vector<1x31x256xf32>
    %cst_8 = arith.constant dense<0.000000e+00> : vector<1x256xf32>
    %13 = vector.multi_reduction <add>, %12, %cst_8 [1] : vector<1x31x256xf32> to vector<1x256xf32>
    %14 = vector.shape_cast %13 : vector<1x256xf32> to vector<1x1x256xf32>
    %15 = arith.mulf %11, %14 : vector<1x1x256xf32>
    %16 = math.rsqrt %15 : vector<1x1x256xf32>
    %17 = arith.mulf %8, %16 : vector<1x1x256xf32>
    %cst_9 = arith.constant -1.000000e+00 : f32
    %cst_10 = arith.constant 1.000000e+00 : f32
    %18 = vector.broadcast %cst_9 : f32 to vector<1x1x256xf32>
    %19 = arith.maximumf %18, %17 : vector<1x1x256xf32>
    %20 = vector.broadcast %cst_10 : f32 to vector<1x1x256xf32>
    %21 = arith.minimumf %20, %19 : vector<1x1x256xf32>
    %c0_11 = arith.constant 0 : index
    %c0_12 = arith.constant 0 : index
    %c0_13 = arith.constant 0 : index
    %22 = vector.load %arg4[%c0_11, %c0_12, %c0_13] : memref<1x1x256xf32, #tpu.memory_space<vmem>>, vector<1x1x256xf32>
    tpu.vector_store %arg4[%c0_11, %c0_12, %c0_13], %21 {strides = array<i32>} : memref<1x1x256xf32, #tpu.memory_space<vmem>>, vector<1x1x256xf32>,
    return
  }
  func.func @transform_0(%arg0: i32, %arg1: i32) -> (i32, i32, i32) {
    %c0_i32 = arith.constant 0 : i32
    %c0_i32_0 = arith.constant 0 : i32
    return %arg0, %c0_i32, %arg1 : i32, i32, i32
  }
  func.func @transform_1(%arg0: i32, %arg1: i32) -> (i32, i32, i32) {
    %c0_i32 = arith.constant 0 : i32
    %c0_i32_0 = arith.constant 0 : i32
    return %arg0, %c0_i32, %arg1 : i32, i32, i32
  }
  func.func @transform_2(%arg0: i32, %arg1: i32) -> (i32, i32, i32) {
    %c0_i32 = arith.constant 0 : i32
    %c0_i32_0 = arith.constant 0 : i32
    return %arg0, %c0_i32, %arg1 : i32, i32, i32
  }
}

</mosaic_0001>

<llo_original>
// kernel: tpu_custom_call.1
$region0: #{tpu_custom_call.1}
  #allocation0 [shape = 'u32[]', space=smem, size = 0x4, offset = 0x4, fixed_abs, tag = 'smem constant byte address 0x4 - core index']
  #allocation1 [shape = 'u32[72,128]{1,0:T(1,128)}', space=vmem, size = 0x9000, scoped, tag = 'internal scratch']
  %s0 = inlined_call_operand.vmem [shape: f32[2,31,256], index: 0, kind: input, shape index: {}]
  %s1 = inlined_call_operand.vmem [shape: f32[2,31,256], index: 1, kind: input, shape index: {}]
  %s2 = inlined_call_operand.hbm [shape: f32[2,1,256], index: 2, kind: output, shape index: {}]
  %s3 = sld [smem:[#allocation0]]
  $region41: #{tpu_custom_call.1} parent=0
    _
  %s5 = ssub.s32 1, %s3
  %s6 = scalar_select 0, %s5, %s3
  $region1: #{tpu_custom_call.1} parent=0
    #allocation2 [shape = 'u8[2048]{0}', space=vmem, size = 0x800, scoped, tag = 'output window, operand 0']
    #allocation3 [shape = 's32[2]{0}', space=sflag, size = 0x8, scoped, tag = 'scoped memory for tpu_custom_call.1']
    %7 = vsyncpa [#allocation3], 0
    %s8 = scalar_lea.sflag [#allocation3], 1
    %9 = vsyncpa %s8, 0
    loop: start=0, step=1, limit=4
    $region2: #{tpu_custom_call.1} parent=1 // loop_pre_header
      _
    $region3: #{tpu_custom_call.1} parent=1 // loop_header
      %s11 = sphi 0, %s15
      %p12 = scmp.ge.s32.totalorder %s11, 4
      %s18 = sphi 0, %s30
      %s19 = sphi 0, %s26
      %s20 = sphi 0, %s18
      %s21 = sphi 0, %s19
      %s22 = sphi 0, %s20
      %s23 = sphi 0, %s21
      %s35 = sphi 0, %s37
      %s38 = sphi 0, %s35
      %s39 = sphi 0, %s38
      %s55 = sphi 0, %s39
      %s63 = sphi 0, %s65
      %s66 = sphi 0, %s63
      %s67 = sphi 0, %s66
      %s83 = sphi 0, %s67
      %s91 = sphi 0, %s93
      %s94 = sphi 0, %s91
      %s95 = sphi 0, %s94
      %s111 = sphi 0, %s95
    $region4: #{tpu_custom_call.1} parent=1 // loop_header_branch
      %14 = sbr.rel (%p12) target = $region8
    $region5: #{tpu_custom_call.1} parent=1 // loop_body
      %s16 = ssub.s32 %s11, 1
      %s17 = ssub.s32 %s11, 2
      %s24 = sadd.s32 1, %s19
      %p25 = scmp.ge.s32.totalorder %s24, 1
      %s26 = scalar_select %p25, 0, %s24
      %s27 = sadd.s32 1, %s18
      %s28 = scalar_select %p25, %s27, %s18
      %p29 = scmp.ge.s32.totalorder %s28, 2
      %s30 = scalar_select %p29, 0, %s28
      %s31 = ssub.s32 %s18, %s30
      %s32 = ssub.s32 %s19, %s26
      %s33 = sor.u32 %s31, %s32
      %p34 = scmp.eq.s32.totalorder %s33, 0
      %s36 = sadd.s32 %s35, 1
      %s37 = scalar_select %p34, %s35, %s36
      %p40 = pneg %p34
      %p41 = scmp.eq.s32.totalorder %s11, 1
      %p42 = por %p40, %p41
      %p43 = scmp.ne.s32.totalorder %s35, %s38
      %p44 = scmp.eq.s32.totalorder %s11, 0
      %p45 = por %p43, %p44
      %p46 = scmp.ne.s32.totalorder %s35, %s38
      %p47 = scmp.eq.s32.totalorder %s16, 1
      %p48 = por %p46, %p47
      %p49 = scmp.ne.s32.totalorder %s38, %s39
      %p50 = scmp.eq.s32.totalorder %s16, 0
      %p51 = por %p49, %p50
      %p52 = scmp.ne.s32.totalorder %s38, %s39
      %p53 = scmp.eq.s32.totalorder %s17, 1
      %p54 = por %p52, %p53
      %p56 = scmp.ne.s32.totalorder %s39, %s55
      %p57 = scmp.eq.s32.totalorder %s17, 0
      %p58 = por %p56, %p57
      %s59 = ssub.s32 %s18, %s30
      %s60 = ssub.s32 %s19, %s26
      %s61 = sor.u32 %s59, %s60
      %p62 = scmp.eq.s32.totalorder %s61, 0
      %s64 = sadd.s32 %s63, 1
      %s65 = scalar_select %p62, %s63, %s64
      %p68 = pneg %p62
      %p69 = scmp.eq.s32.totalorder %s11, 1
      %p70 = por %p68, %p69
      %p71 = scmp.ne.s32.totalorder %s63, %s66
      %p72 = scmp.eq.s32.totalorder %s11, 0
      %p73 = por %p71, %p72
      %p74 = scmp.ne.s32.totalorder %s63, %s66
      %p75 = scmp.eq.s32.totalorder %s16, 1
      %p76 = por %p74, %p75
      %p77 = scmp.ne.s32.totalorder %s66, %s67
      %p78 = scmp.eq.s32.totalorder %s16, 0
      %p79 = por %p77, %p78
      %p80 = scmp.ne.s32.totalorder %s66, %s67
      %p81 = scmp.eq.s32.totalorder %s17, 1
      %p82 = por %p80, %p81
      %p84 = scmp.ne.s32.totalorder %s67, %s83
      %p85 = scmp.eq.s32.totalorder %s17, 0
      %p86 = por %p84, %p85
      %s87 = ssub.s32 %s18, %s30
      %s88 = ssub.s32 %s19, %s26
      %s89 = sor.u32 %s87, %s88
      %p90 = scmp.eq.s32.totalorder %s89, 0
      %s92 = sadd.s32 %s91, 1
      %s93 = scalar_select %p90, %s91, %s92
      %p96 = pneg %p90
      %p97 = scmp.eq.s32.totalorder %s11, 1
      %p98 = por %p96, %p97
      %p99 = scmp.ne.s32.totalorder %s91, %s94
      %p100 = scmp.eq.s32.totalorder %s11, 0
      %p101 = por %p99, %p100
      %p102 = scmp.ne.s32.totalorder %s91, %s94
      %p103 = scmp.eq.s32.totalorder %s16, 1
      %p104 = por %p102, %p103
      %p105 = scmp.ne.s32.totalorder %s94, %s95
      %p106 = scmp.eq.s32.totalorder %s16, 0
      %p107 = por %p105, %p106
      %p108 = scmp.ne.s32.totalorder %s94, %s95
      %p109 = scmp.eq.s32.totalorder %s17, 1
      %p110 = por %p108, %p109
      %p112 = scmp.ne.s32.totalorder %s95, %s111
      %p113 = scmp.eq.s32.totalorder %s17, 0
      %p114 = por %p112, %p113
      %p115 = scmp.le.s32.totalorder 1, %s11
      %p116 = scmp.lt.s32.totalorder %s11, 3
      %p117 = pnand %p115, %p116
      %p118 = pneg %p117
      // Predicated region
      $region9: #{tpu_custom_call.1} parent=5 // pred_check
        _
      $region10: #{tpu_custom_call.1} parent=5 // pred_check_branch
        %120 = sbr.rel (%p117) target = $region12
      $region11: #{tpu_custom_call.1} parent=5 // pred_region
        %s121 = ssub.s32 %s11, 1
      $region12: #{tpu_custom_call.1} parent=5 // pred_fallthru
        _
      %p122 = scmp.lt.s32.totalorder %s11, 2
      // Predicated region
      $region13: #{tpu_custom_call.1} parent=5 // pred_check
        %p123 = pneg %p122
      $region14: #{tpu_custom_call.1} parent=5 // pred_check_branch
        %125 = sbr.rel (%p123) target = $region16
      $region15: #{tpu_custom_call.1} parent=5 // pred_region
        // Predicated region
        $region17: #{tpu_custom_call.1} parent=15 // pred_check
          %p126 = pneg %p45
        $region18: #{tpu_custom_call.1} parent=15 // pred_check_branch
          %128 = sbr.rel (%p126) target = $region20
        $region19: #{tpu_custom_call.1} parent=15 // pred_region
          %s129 = smul.u32 2, %s19
          %p130 = scmp.lt.s32.totalorder %s18, 1
          %s131 = scalar_select %p130, %s18, 1
          %p132 = scmp.lt.s32.totalorder %s129, 1
          %s133 = scalar_select %p132, %s129, 1
          %s134 = smul.addr %s131, 8
          %s135 = sadd.s32 %s133, %s134
          %s136 = smul.addr %s135, 8
          %s137 = scalar_lea.vmem %s0, %s136
          %s138 = smul.u32 2, %s19
        $region20: #{tpu_custom_call.1} parent=15 // pred_fallthru
          _
        // Predicated region
        $region21: #{tpu_custom_call.1} parent=15 // pred_check
          %p139 = pneg %p73
        $region22: #{tpu_custom_call.1} parent=15 // pred_check_branch
          %141 = sbr.rel (%p139) target = $region24
        $region23: #{tpu_custom_call.1} parent=15 // pred_region
          %s142 = smul.u32 2, %s19
          %p143 = scmp.lt.s32.totalorder %s18, 1
          %s144 = scalar_select %p143, %s18, 1
          %p145 = scmp.lt.s32.totalorder %s142, 1
          %s146 = scalar_select %p145, %s142, 1
          %s147 = smul.addr %s144, 8
          %s148 = sadd.s32 %s146, %s147
          %s149 = smul.addr %s148, 8
          %s150 = scalar_lea.vmem %s1, %s149
          %s151 = smul.u32 2, %s19
        $region24: #{tpu_custom_call.1} parent=15 // pred_fallthru
          _
      $region16: #{tpu_custom_call.1} parent=5 // pred_fallthru
        _
      %p152 = scmp.le.s32.totalorder 1, %s11
      %p153 = scmp.lt.s32.totalorder %s11, 3
      %p154 = pnand %p152, %p153
      %p155 = pneg %p154
      // Predicated region
      $region25: #{tpu_custom_call.1} parent=5 // pred_check
        _
      $region26: #{tpu_custom_call.1} parent=5 // pred_check_branch
        %157 = sbr.rel (%p154) target = $region28
      $region27: #{tpu_custom_call.1} parent=5 // pred_region
        %s158 = ssub.s32 %s11, 1
        %s159 = smul.u32 2, %s21
        %p160 = scmp.lt.s32.totalorder %s20, 1
        %s161 = scalar_select %p160, %s20, 1
        %p162 = scmp.lt.s32.totalorder %s159, 1
        %s163 = scalar_select %p162, %s159, 1
        %s164 = smul.addr %s161, 8
        %s165 = sadd.s32 %s163, %s164
        %s166 = smul.addr %s165, 8
        %s167 = scalar_lea.vmem %s0, %s166
        %p168 = pneg %p51
        %p169 = pneg %p48
        %s170 = smul.u32 2, %s21
        %p171 = scmp.lt.s32.totalorder %s20, 1
        %s172 = scalar_select %p171, %s20, 1
        %p173 = scmp.lt.s32.totalorder %s170, 1
        %s174 = scalar_select %p173, %s170, 1
        %s175 = smul.addr %s172, 8
        %s176 = sadd.s32 %s174, %s175
        %s177 = smul.addr %s176, 8
        %s178 = scalar_lea.vmem %s1, %s177
        %p179 = pneg %p79
        %p180 = pneg %p76
        %p181 = pneg %p107
        %p182 = pneg %p104
        %s183 = sand.u32 %s94, 1
        %s184 = scalar_lea.sflag [#allocation3], %s183
        %s185 = sand.u32 %s94, 1
        %s186 = smul.addr %s185, 2
        %s187 = scalar_lea.vmem [#allocation2], %s186
        %s188 = smul.u32 2, %s21
        %p189 = scmp.lt.s32.totalorder %s20, 1
        %s190 = scalar_select %p189, %s20, 1
        %p191 = scmp.lt.s32.totalorder %s188, 1
        %s192 = scalar_select %p191, %s188, 1
        %s193 = smul.addr %s190, 8
        %s194 = sadd.s32 %s192, %s193
        %s195 = smul.addr %s194, 8
        %s196 = scalar_lea.vmem %s0, %s195
        %s197 = smul.u32 2, %s21
        %s198 = smul.u32 2, %s21
        %p199 = scmp.lt.s32.totalorder %s20, 1
        %s200 = scalar_select %p199, %s20, 1
        %p201 = scmp.lt.s32.totalorder %s198, 1
        %s202 = scalar_select %p201, %s198, 1
        %s203 = smul.addr %s200, 8
        %s204 = sadd.s32 %s202, %s203
        %s205 = smul.addr %s204, 8
        %s206 = scalar_lea.vmem %s1, %s205
        %s207 = smul.u32 2, %s21
        %s208 = smul.u32 2, %s21
        %v209 = vld [vmem:[%s196] sm:$0xff]
        %v210 = vld [vmem:[%s196 + $0x8] sm:$0xff]
        %v211 = vld [vmem:[%s196 + $0x10] sm:$0xff]
        %v212 = vld [vmem:[%s196 + $0x18] sm:$0xff]
        %v213 = vld [vmem:[%s196 + $0x20] sm:$0xff]
        %v214 = vld [vmem:[%s196 + $0x28] sm:$0xff]
        %v215 = vld [vmem:[%s196 + $0x30] sm:$0x7f]
        %v216 = vld [vmem:[%s196 + $0x38] sm:$0x7f]
        %v217 = vadd.f32 %v209, 1e-08
        %v218 = vadd.f32 %v210, 1e-08
        %v219 = vadd.f32 %v211, 1e-08
        %v220 = vadd.f32 %v212, 1e-08
        %v221 = vadd.f32 %v213, 1e-08
        %v222 = vadd.f32 %v214, 1e-08
        %v223 = vadd.f32 %v215, 1e-08
        %v224 = vadd.f32 %v216, 1e-08
        %v225 = vld [vmem:[%s206] sm:$0xff]
        %v226 = vld [vmem:[%s206 + $0x8] sm:$0xff]
        %v227 = vld [vmem:[%s206 + $0x10] sm:$0xff]
        %v228 = vld [vmem:[%s206 + $0x18] sm:$0xff]
        %v229 = vld [vmem:[%s206 + $0x20] sm:$0xff]
        %v230 = vld [vmem:[%s206 + $0x28] sm:$0xff]
        %v231 = vld [vmem:[%s206 + $0x30] sm:$0x7f]
        %v232 = vld [vmem:[%s206 + $0x38] sm:$0x7f]
        %v233 = vadd.f32 %v225, 1e-08
        %v234 = vadd.f32 %v226, 1e-08
        %v235 = vadd.f32 %v227, 1e-08
        %v236 = vadd.f32 %v228, 1e-08
        %v237 = vadd.f32 %v229, 1e-08
        %v238 = vadd.f32 %v230, 1e-08
        %v239 = vadd.f32 %v231, 1e-08
        %v240 = vadd.f32 %v232, 1e-08
        %v241 = vmul.f32 %v217, %v233
        %v242 = vmul.f32 %v218, %v234
        %v243 = vmul.f32 %v219, %v235
        %v244 = vmul.f32 %v220, %v236
        %v245 = vmul.f32 %v221, %v237
        %v246 = vmul.f32 %v222, %v238
        %v247 = vmul.f32 %v223, %v239
        %v248 = vmul.f32 %v224, %v240
        %v249 = vadd.f32 %v241, %v243
        %v250 = vadd.f32 %v249, %v245
        %vm251 = vcmask 1046528
        %v252 = vsel %vm251, %v247, 0.0
        %v253 = vadd.f32 %v250, %v252
        %v254 = vrot.slane %v253, 4
        %v255 = vadd.f32 %v253, %v254
        %v256 = vrot.slane %v255, 2
        %v257 = vadd.f32 %v255, %v256
        %v258 = vrot.slane %v257, 1
        %v259 = vadd.f32 %v257, %v258
        %v260 = vadd.f32 %v242, %v244
        %v261 = vadd.f32 %v260, %v246
        %v262 = vsel %vm251, %v248, 0.0
        %v263 = vadd.f32 %v261, %v262
        %v264 = vrot.slane %v263, 4
        %v265 = vadd.f32 %v263, %v264
        %v266 = vrot.slane %v265, 2
        %v267 = vadd.f32 %v265, %v266
        %v268 = vrot.slane %v267, 1
        %v269 = vadd.f32 %v267, %v268
        %v270 = vmul.f32 %v217, %v217
        %v271 = vmul.f32 %v218, %v218
        %v272 = vmul.f32 %v219, %v219
        %v273 = vmul.f32 %v220, %v220
        %v274 = vmul.f32 %v221, %v221
        %v275 = vmul.f32 %v222, %v222
        %v276 = vmul.f32 %v223, %v223
        %v277 = vmul.f32 %v224, %v224
        %v278 = vadd.f32 %v270, %v272
        %v279 = vadd.f32 %v278, %v274
        %v280 = vsel %vm251, %v276, 0.0
        %v281 = vadd.f32 %v279, %v280
        %v282 = vrot.slane %v281, 4
        %v283 = vadd.f32 %v281, %v282
        %v284 = vrot.slane %v283, 2
        %v285 = vadd.f32 %v283, %v284
        %v286 = vrot.slane %v285, 1
        %v287 = vadd.f32 %v285, %v286
        %v288 = vadd.f32 %v271, %v273
        %v289 = vadd.f32 %v288, %v275
        %v290 = vsel %vm251, %v277, 0.0
        %v291 = vadd.f32 %v289, %v290
        %v292 = vrot.slane %v291, 4
        %v293 = vadd.f32 %v291, %v292
        %v294 = vrot.slane %v293, 2
        %v295 = vadd.f32 %v293, %v294
        %v296 = vrot.slane %v295, 1
        %v297 = vadd.f32 %v295, %v296
        %v298 = vmul.f32 %v233, %v233
        %v299 = vmul.f32 %v234, %v234
        %v300 = vmul.f32 %v235, %v235
        %v301 = vmul.f32 %v236, %v236
        %v302 = vmul.f32 %v237, %v237
        %v303 = vmul.f32 %v238, %v238
        %v304 = vmul.f32 %v239, %v239
        %v305 = vmul.f32 %v240, %v240
        %v306 = vadd.f32 %v298, %v300
        %v307 = vadd.f32 %v306, %v302
        %v308 = vsel %vm251, %v304, 0.0
        %v309 = vadd.f32 %v307, %v308
        %v310 = vrot.slane %v309, 4
        %v311 = vadd.f32 %v309, %v310
        %v312 = vrot.slane %v311, 2
        %v313 = vadd.f32 %v311, %v312
        %v314 = vrot.slane %v313, 1
        %v315 = vadd.f32 %v313, %v314
        %v316 = vadd.f32 %v299, %v301
        %v317 = vadd.f32 %v316, %v303
        %v318 = vsel %vm251, %v305, 0.0
        %v319 = vadd.f32 %v317, %v318
        %v320 = vrot.slane %v319, 4
        %v321 = vadd.f32 %v319, %v320
        %v322 = vrot.slane %v321, 2
        %v323 = vadd.f32 %v321, %v322
        %v324 = vrot.slane %v323, 1
        %v325 = vadd.f32 %v323, %v324
        %v326 = vmul.f32 %v287, %v315
        %v327 = vmul.f32 %v297, %v325
        %v328 = vrsqrt.pop %v326
        %v329 = vmul.f32 %v328, %v326
        %v330 = vmul.f32 %v329, %v328
        %v331 = vmul.f32 0.5, %v330
        %v332 = vsub.f32 1.5, %v331
        %v333 = vmul.f32 %v328, %v332
        %vm334 = vweird.f32 %v326
        %vm335 = vweird.f32 %v328
        %vm336 = vmor %vm334, %vm335
        %v337 = vsel %vm336, %v328, %v333
        %v338 = vrsqrt.pop %v327
        %v339 = vmul.f32 %v338, %v327
        %v340 = vmul.f32 %v339, %v338
        %v341 = vmul.f32 0.5, %v340
        %v342 = vsub.f32 1.5, %v341
        %v343 = vmul.f32 %v338, %v342
        %vm344 = vweird.f32 %v327
        %vm345 = vweird.f32 %v338
        %vm346 = vmor %vm344, %vm345
        %v347 = vsel %vm346, %v338, %v343
        %v348 = vmul.f32 %v259, %v337
        %v349 = vmul.f32 %v269, %v347
        %v350 = vmax.f32 %v348, -1.0
        %v351 = vmax.f32 %v349, -1.0
        %v352 = vmin.f32 %v350, 1.0
        %v353 = vmin.f32 %v351, 1.0
        %v356 = vrot.slane %v353, 7
        %vm357 = vcmask 1040384
        %v358 = vsel %vm357, %v352, %v356
        %v360 = vlaneseq
        %vm361 = vcmp.ge.s32.totalorder %v360, 0
        %vm362 = vcmp.lt.s32.totalorder %v360, 256
        %vm363 = vmand %vm361, %vm362
        %364 = vst.msk [vmem:[%s187] sm:$0x3] %vm363, %v358
        %s365 = sand.u32 %s94, 1
        %s366 = scalar_lea.sflag [#allocation3], %s365
        %s367 = sand.u32 %s94, 1
        %s368 = smul.addr %s367, 2
        %s369 = scalar_lea.vmem [#allocation2], %s368
        // Predicated region
        $region29: #{tpu_custom_call.1} parent=27 // pred_check
          %p370 = pneg %p104
        $region30: #{tpu_custom_call.1} parent=27 // pred_check_branch
          %372 = sbr.rel (%p370) target = $region32
        $region31: #{tpu_custom_call.1} parent=27 // pred_region
          %s373 = smul.u32 2, %s21
          %375 = vsyncadd %s366, 0
          %s376 = smul.addr %s20, 2
          %s377 = sadd.s32 %s373, %s376
          %s378 = scalar_lea.hbm %s2, %s377
          %s380 = sshll.u32 %s369, 4
          %s381 = int_to_ptr.vmem [resolvable:$true] %s380
          %s382 = sshll.u32 %s378, 4
          %s383 = int_to_ptr.hbm [resolvable:$true] %s382
          %385 = dma.vmem_to_hbm [thread:$0]  %s381, 32, %s383, %s366
        $region32: #{tpu_custom_call.1} parent=27 // pred_fallthru
          _
      $region28: #{tpu_custom_call.1} parent=5 // pred_fallthru
        _
      %p386 = scmp.le.s32.totalorder 2, %s11
      // Predicated region
      $region33: #{tpu_custom_call.1} parent=5 // pred_check
        %p387 = pneg %p386
      $region34: #{tpu_custom_call.1} parent=5 // pred_check_branch
        %389 = sbr.rel (%p387) target = $region36
      $region35: #{tpu_custom_call.1} parent=5 // pred_region
        %s390 = ssub.s32 %s11, 2
        // Predicated region
        $region37: #{tpu_custom_call.1} parent=35 // pred_check
          %p391 = pneg %p110
        $region38: #{tpu_custom_call.1} parent=35 // pred_check_branch
          %393 = sbr.rel (%p391) target = $region40
        $region39: #{tpu_custom_call.1} parent=35 // pred_region
          %s394 = sand.u32 %s95, 1
          %s395 = scalar_lea.sflag [#allocation3], %s394
          %s396 = sand.u32 %s95, 1
          %s397 = smul.addr %s396, 2
          %s398 = scalar_lea.vmem [#allocation2], %s397
          %400 = dma.done %s395, 32
        $region40: #{tpu_custom_call.1} parent=35 // pred_fallthru
          _
      $region36: #{tpu_custom_call.1} parent=5 // pred_fallthru
        _
    $region6: #{tpu_custom_call.1} parent=1 // loop_footer
      %s15 = sadd.s32 1, %s11
    $region7: #{tpu_custom_call.1} parent=1 // loop_footer_branch
      %10 = sbr.rel target = $region3
    $region8: #{tpu_custom_call.1} parent=1 // loop_exit
      _
    %401 = vsyncpa [#allocation3], 1
    %s402 = scalar_lea.sflag [#allocation3], 1
    %403 = vsyncpa %s402, 1

</llo_original>
